<compile_context>
chip_gen: v7x
topology: tpu7x:2x2x1
jax: 0.10.0
libtpu: 0.0.40
codegen_flags: <defaults>
</compile_context>

<pallas_src>
import functools
import math

import jax
import jax.numpy as jnp
from jax import lax
from jax.experimental import pallas as pl
from jax.experimental.pallas import tpu as pltpu


_ONEHOT_MAX_VOCAB = 1024   # above this the one-hot LHS / MXU work stops paying off
_ONEHOT_CHUNK = 512        # tokens per in-kernel matmul sub-chunk


def _round_up(x, m):
    return ((x + m - 1) // m) * m


def _sublane_align(dtype):
    return max(8, 32 // jnp.dtype(dtype).itemsize)   # f32 -> 8, bf16 -> 16, i8 -> 32


def _vmem_tile_bytes(rows, cols, dtype):
    """VMEM footprint of a (rows, cols) array after (sublane, 128) layout tiling."""
    itemsize = jnp.dtype(dtype).itemsize
    return (_round_up(max(rows, 1), _sublane_align(dtype))
            * _round_up(max(cols, 1), 128) * itemsize)


def _vmem_capacity_bytes():
    """Per-TensorCore VMEM capacity; conservative (v7x-sized) fallback."""
    try:
        cap = int(getattr(pltpu.get_tpu_info(), "vmem_capacity_bytes", 0))
        if cap > 0:
            return cap
    except Exception:
        pass
    return 64 * 1024 * 1024


def _split_f32_to_3bf16(x):
    """Exact split of f32 x into three bf16 summands with x == hi+mid+lo (f32).

    Truncation (mantissa masking) rather than round-to-nearest keeps the three
    8-bit mantissa windows disjoint, so reconstruction is bit-exact.
    """
    mask = jnp.uint32(0xFFFF0000)
    hi_f = pltpu.bitcast(pltpu.bitcast(x, jnp.uint32) & mask, jnp.float32)
    r = x - hi_f                                            # exact (Dekker split)
    mid_f = pltpu.bitcast(pltpu.bitcast(r, jnp.uint32) & mask, jnp.float32)
    lo_f = r - mid_f                                        # exact, <= 8 mantissa bits
    return (hi_f.astype(jnp.bfloat16),
            mid_f.astype(jnp.bfloat16),
            lo_f.astype(jnp.bfloat16))


def _onehot_gather_kernel(ids_ref, emb_ref, out_ref, *, chunk):
    # ids_ref : (tile, 1) int32 VMEM block for this grid step (ids pre-clamped)
    # emb_ref : (V, E) table, whole array resident in VMEM
    #           (no block_shape => placed once, single copy, no per-step DMA /
    #            double buffer)
    # out_ref : (tile, E) output block
    tile = out_ref.shape[0]
    vocab = emb_ref.shape[0]
    embed = out_ref.shape[1]
    table = emb_ref[...]

    if table.dtype == jnp.float32:
        parts = _split_f32_to_3bf16(table)       # exact 3 x bf16 decomposition
    else:                                        # bf16 table: single pass is exact
        parts = (table,)

    # Static sub-chunk loop keeps the (chunk, V) one-hot intermediate small.
    for c0 in range(0, tile, chunk):
        csz = min(chunk, tile - c0)
        ids = ids_ref[pl.ds(c0, csz), :]                                   # (csz, 1)
        onehot = (ids == lax.broadcasted_iota(jnp.int32, (csz, vocab), 1))
        onehot = onehot.astype(jnp.bfloat16)                               # exact 0/1
        acc = jnp.zeros((csz, embed), jnp.float32)
        for p in parts:
            acc = acc + jnp.dot(onehot, p, preferred_element_type=jnp.float32)
        out_ref[pl.ds(c0, csz), :] = acc.astype(out_ref.dtype)


def _rowcopy_gather_kernel(idx_smem, emb_ref, out_ref):
    # Large-vocab fallback: per-token row copy (ids need scalar addressing).
    # idx_smem : (n_pad,) int32 scalar-prefetched ids (pre-clamped in wrapper)
    # emb_ref  : (V, E) table resident in VMEM
    # out_ref  : (tile, E) output block
    tile = out_ref.shape[0]
    base = pl.program_id(0) * tile

    def body(t, carry):
        out_ref[pl.ds(t, 1), :] = emb_ref[pl.ds(idx_smem[base + t], 1), :]
        return carry

    lax.fori_loop(0, tile, body, 0, unroll=8)


@functools.partial(jax.jit, static_argnames=("tile_tokens",))
def embedding_lookup(itemseq_input, emb_table, *, tile_tokens=2048):
    """Pallas TPU equivalent of EmbeddingLayer.forward(itemseq_input)."""
    idx_shape = itemseq_input.shape
    V, E = emb_table.shape
    dtype = emb_table.dtype
    itemsize = jnp.dtype(dtype).itemsize
    n = math.prod(idx_shape)

    if n == 0:
        return jnp.zeros((*idx_shape, E), dtype)

    row_align = _sublane_align(dtype)

    # --- grid / tile selection ---------------------------------------------
    # Big tiles amortize the ~0.35us/step overhead; keep >= 2 (even) steps when
    # possible so both v7x TensorCores get equal work on the "parallel" axis.
    steps = max(1, pl.cdiv(n, tile_tokens))
    if steps == 1 and n >= 2 * row_align:
        steps = 2
    if steps > 1 and steps % 2 == 1:
        steps += 1
    tile = _round_up(pl.cdiv(n, steps), row_align)
    n_pad = steps * tile

    # --- generation-aware VMEM budget ----------------------------------------
    vmem_cap = _vmem_capacity_bytes()                        # per TensorCore
    table_vmem = _vmem_tile_bytes(V, E, dtype)               # single resident copy
    out_vmem = 2 * _vmem_tile_bytes(tile, E, dtype)          # double-buffered output
    ids_vmem = 2 * _vmem_tile_bytes(tile, 1, jnp.int32)      # double-buffered ids
    work_vmem = out_vmem + ids_vmem + (4 << 20)              # one-hot / scratch slack
    if table_vmem + work_vmem > int(0.9 * vmem_cap):
        # TODO(synk): HBM-resident table (memory_space=pl.ANY) with a pipelined
        # per-row DMA gather (8-16 outstanding copies) for tables that do not
        # fit per-core VMEM (hit first on v7x's 64 MiB).
        raise NotImplementedError(
            "embedding table does not fit the per-core VMEM gather path")
    vmem_limit = int(min(0.9 * vmem_cap,
                         max(32 << 20, table_vmem + work_vmem + (4 << 20))))

    # --- ids: flatten, clamp once (hoisted out of the kernel), pad -----------
    ids = itemseq_input.reshape(-1).astype(jnp.int32)
    # nn.Embedding raises on out-of-range ids; we clamp (documented divergence)
    # so a bad id can never become a silent OOB VMEM read.
    ids = jnp.clip(ids, 0, V - 1)
    ids = jnp.pad(ids, (0, n_pad - n))     # padded slots gather row 0, dropped below

    grid = (steps,)
    table_spec = pl.BlockSpec(memory_space=pltpu.MemorySpace.VMEM)  # whole table
    out_shape = jax.ShapeDtypeStruct((n_pad, E), dtype)
    hbm_bytes = int(V * E * itemsize + n_pad * 4 + n_pad * E * itemsize)

    use_onehot = (V <= _ONEHOT_MAX_VOCAB
                  and (dtype == jnp.float32 or dtype == jnp.bfloat16))

    if use_onehot:
        chunk = min(_ONEHOT_CHUNK, tile)
        n_passes = 3 if dtype == jnp.float32 else 1
        out = pl.pallas_call(
            functools.partial(_onehot_gather_kernel, chunk=chunk),
            out_shape=out_shape,
            grid=grid,
            in_specs=[pl.BlockSpec((tile, 1), lambda i: (i, 0)), table_spec],
            out_specs=pl.BlockSpec((tile, E), lambda i: (i, 0)),
            compiler_params=pltpu.CompilerParams(
                dimension_semantics=("parallel",),
                vmem_limit_bytes=vmem_limit),
            cost_estimate=pl.CostEstimate(
                flops=int(2 * n_pad * V * E * n_passes),
                transcendentals=0,
                bytes_accessed=hbm_bytes),
        )(ids.reshape(n_pad, 1), emb_table)
    else:
        if 4 * n_pad > (1 << 20):
            # TODO(synk): tile the id stream (per-tile SMEM blocks or index-driven
            # DMA) instead of one whole-array SMEM prefetch for very long sequences.
            raise NotImplementedError(
                "id stream too long for the SMEM-prefetch large-vocab path")
        grid_spec = pltpu.PrefetchScalarGridSpec(
            num_scalar_prefetch=1,                  # ids -> SMEM (scalar addressing)
            grid=grid,
            in_specs=[table_spec],
            out_specs=pl.BlockSpec((tile, E), lambda i, ids_ref: (i, 0)),
        )
        out = pl.pallas_call(
            _rowcopy_gather_kernel,
            out_shape=out_shape,
            grid_spec=grid_spec,
            compiler_params=pltpu.CompilerParams(
                dimension_semantics=("parallel",),
                vmem_limit_bytes=vmem_limit),
            cost_estimate=pl.CostEstimate(
                flops=0, transcendentals=0, bytes_accessed=hbm_bytes),
        )(ids, emb_table)

    return out[:n].reshape(*idx_shape, E)


def init_embedding_table(key, item_size, embed_size, mean=0.0, std=0.02):
    # Mirrors utils.truncated_normal_(weight, 0, 0.02): N(0, 0.02) truncated at +-2 sigma.
    w = jax.random.truncated_normal(
        key, -2.0, 2.0, (item_size, embed_size), dtype=jnp.float32)
    return w * std + mean


if __name__ == "__main__":
    item_size = 64      # vocab size
    embed_size = 32     # embedding dim
    batch, seq = 2, 8

    key = jax.random.PRNGKey(0)
    k_w, k_idx = jax.random.split(key)

    emb_table = init_embedding_table(k_w, item_size, embed_size)
    itemseq_input = jax.random.randint(k_idx, (batch, seq), 0, item_size, dtype=jnp.int32)

    # Small case (module's nominal sizes).
    out = jax.block_until_ready(embedding_lookup(itemseq_input, emb_table))
    ref = jnp.take(emb_table, itemseq_input, axis=0)
    assert out.shape == (batch, seq, embed_size)
    assert jnp.array_equal(out, ref), "mismatch vs reference gather (small case)"

    # Bigger case exercising the large-tile / multi-chunk MXU path.
    itemseq_big = jax.random.randint(k_idx, (4, 1024), 0, item_size, dtype=jnp.int32)
    out_big = jax.block_until_ready(embedding_lookup(itemseq_big, emb_table))
    ref_big = jnp.take(emb_table, itemseq_big, axis=0)
    assert jnp.array_equal(out_big, ref_big), "mismatch vs reference gather (big case)"

    print("KERNEL_OK")
</pallas_src>

<mosaic_0001>
module attributes {stable_mosaic.version = 11 : i64} {
  func.func @_onehot_gather_kernel(%arg0: i32, %arg1: memref<8x1xi32, #tpu.memory_space<vmem>>, %arg2: memref<64x32xf32, #tpu.memory_space<vmem>>, %arg3: memref<8x32xf32, #tpu.memory_space<vmem>>) attributes {dimension_semantics = [#tpu.dimension_semantics<parallel>], iteration_bounds = array<i64: 2>, scalar_prefetch = 0 : i64, scratch_operands = 0 : i64, tpu.core_type = #tpu.core_type<tc>, window_params = [{transform_indices = @transform_0, window_bounds = array<i64: 8, 1>}, {pipeline_mode = #tpu.pipeline_mode<synchronous>, transform_indices = @transform_1, window_bounds = array<i64: 64, 32>}, {transform_indices = @transform_2, window_bounds = array<i64: 8, 32>}]} {
    %c0 = arith.constant 0 : index
    %c0_0 = arith.constant 0 : index
    %0 = vector.load %arg2[%c0, %c0_0] : memref<64x32xf32, #tpu.memory_space<vmem>>, vector<64x32xf32>
    %1 = tpu.bitcast %0 : vector<64x32xf32> -> vector<64x32xi32>
    %c-65536_i32 = arith.constant -65536 : i32
    %2 = vector.broadcast %c-65536_i32 : i32 to vector<64x32xi32>
    %3 = arith.andi %1, %2 : vector<64x32xi32>
    %4 = tpu.bitcast %3 : vector<64x32xi32> -> vector<64x32xf32>
    %5 = arith.subf %0, %4 : vector<64x32xf32>
    %6 = tpu.bitcast %5 : vector<64x32xf32> -> vector<64x32xi32>
    %c-65536_i32_1 = arith.constant -65536 : i32
    %7 = vector.broadcast %c-65536_i32_1 : i32 to vector<64x32xi32>
    %8 = arith.andi %6, %7 : vector<64x32xi32>
    %9 = tpu.bitcast %8 : vector<64x32xi32> -> vector<64x32xf32>
    %10 = arith.subf %5, %9 : vector<64x32xf32>
    %11 = arith.truncf %4 : vector<64x32xf32> to vector<64x32xbf16>
    %12 = arith.truncf %9 : vector<64x32xf32> to vector<64x32xbf16>
    %13 = arith.truncf %10 : vector<64x32xf32> to vector<64x32xbf16>
    %c0_2 = arith.constant 0 : index
    %c0_3 = arith.constant 0 : index
    %14 = vector.load %arg1[%c0_2, %c0_3] : memref<8x1xi32, #tpu.memory_space<vmem>>, vector<8x1xi32>
    %15 = tpu.iota {dimensions = array<i32: 1>} : vector<8x64xi32>
    %16 = vector.broadcast %14 : vector<8x1xi32> to vector<8x64xi32>
    %17 = arith.cmpi eq, %16, %15 : vector<8x64xi32>
    %18 = arith.extui %17 : vector<8x64xi1> to vector<8x64xi32>
    %19 = arith.sitofp %18 : vector<8x64xi32> to vector<8x64xf32>
    %20 = arith.truncf %19 : vector<8x64xf32> to vector<8x64xbf16>
    %cst = arith.constant 0.000000e+00 : f32
    %21 = vector.broadcast %cst : f32 to vector<8x32xf32>
    %cst_4 = arith.constant dense<0.000000e+00> : vector<8x32xf32>
    %22 = tpu.matmul %20, %11, %cst_4 {dimension_numbers = #tpu.dot_dimension_numbers<[1], [0], [0], [1], [0, 0, 1, 1], [], []>} : vector<8x64xbf16>, vector<64x32xbf16>, vector<8x32xf32> -> vector<8x32xf32>
    %23 = arith.addf %21, %22 : vector<8x32xf32>
    %cst_5 = arith.constant dense<0.000000e+00> : vector<8x32xf32>
    %24 = tpu.matmul %20, %12, %cst_5 {dimension_numbers = #tpu.dot_dimension_numbers<[1], [0], [0], [1], [0, 0, 1, 1], [], []>} : vector<8x64xbf16>, vector<64x32xbf16>, vector<8x32xf32> -> vector<8x32xf32>
    %25 = arith.addf %23, %24 : vector<8x32xf32>
    %cst_6 = arith.constant dense<0.000000e+00> : vector<8x32xf32>
    %26 = tpu.matmul %20, %13, %cst_6 {dimension_numbers = #tpu.dot_dimension_numbers<[1], [0], [0], [1], [0, 0, 1, 1], [], []>} : vector<8x64xbf16>, vector<64x32xbf16>, vector<8x32xf32> -> vector<8x32xf32>
    %27 = arith.addf %25, %26 : vector<8x32xf32>
    %c0_7 = arith.constant 0 : index
    %c0_8 = arith.constant 0 : index
    %28 = vector.load %arg3[%c0_7, %c0_8] : memref<8x32xf32, #tpu.memory_space<vmem>>, vector<8x32xf32>
    tpu.vector_store %arg3[%c0_7, %c0_8], %27 {strides = array<i32>} : memref<8x32xf32, #tpu.memory_space<vmem>>, vector<8x32xf32>,
    return
  }
  func.func @transform_0(%arg0: i32) -> (i32, i32) {
    %c0_i32 = arith.constant 0 : i32
    %c0_i32_0 = arith.constant 0 : i32
    return %arg0, %c0_i32 : i32, i32
  }
  func.func @transform_1(%arg0: i32) -> (i32, i32) {
    %c0_i32 = arith.constant 0 : i32
    %c0_i32_0 = arith.constant 0 : i32
    %c0_i32_1 = arith.constant 0 : i32
    return %c0_i32, %c0_i32_0 : i32, i32
  }
  func.func @transform_2(%arg0: i32) -> (i32, i32) {
    %c0_i32 = arith.constant 0 : i32
    %c0_i32_0 = arith.constant 0 : i32
    return %arg0, %c0_i32 : i32, i32
  }
}

</mosaic_0001>

<llo_original>
// kernel: embedding_lookup.1
$region0: #{embedding_lookup.1}
  #allocation0 [shape = 'u32[]', space=smem, size = 0x4, offset = 0x4, fixed_abs, tag = 'smem constant byte address 0x4 - core index']
  #allocation1 [shape = 'u32[144,128]{1,0:T(1,128)}', space=vmem, size = 0x12000, scoped, tag = 'internal scratch']
  %s0 = inlined_call_operand.vmem [shape: s32[16,1], index: 0, kind: input, shape index: {}]
  %s1 = inlined_call_operand.vmem [shape: f32[64,32], index: 1, kind: input, shape index: {}]
  %s2 = inlined_call_operand.hbm [shape: f32[16,32], index: 2, kind: output, shape index: {}]
  %s3 = sld [smem:[#allocation0]]
  $region41: #{embedding_lookup.1} parent=0
    _
  %s5 = ssub.s32 1, %s3
  %s6 = scalar_select 0, %s5, %s3
  $region1: #{embedding_lookup.1} parent=0
    #allocation2 [shape = 'u8[8192]{0}', space=vmem, size = 0x2000, scoped, tag = 'output window, operand 0']
    #allocation3 [shape = 's32[2]{0}', space=sflag, size = 0x8, scoped, tag = 'scoped memory for embedding_lookup.1']
    %7 = vsyncpa [#allocation3], 0
    %s8 = scalar_lea.sflag [#allocation3], 1
    %9 = vsyncpa %s8, 0
    loop: start=0, step=1, limit=4
    $region2: #{embedding_lookup.1} parent=1 // loop_pre_header
      _
    $region3: #{embedding_lookup.1} parent=1 // loop_header
      %s11 = sphi 0, %s15
      %p12 = scmp.ge.s32.totalorder %s11, 4
      %s21 = sphi 0, %s23
      %s24 = sphi 0, %s21
      %s25 = sphi 0, %s24
      %s41 = sphi 0, %s25
      %s45 = sphi 0, %s45
      %s47 = sphi 0, %s45
      %s48 = sphi 0, %s47
      %s62 = sphi 0, %s48
      %s68 = sphi 0, %s70
      %s71 = sphi 0, %s68
      %s72 = sphi 0, %s71
      %s88 = sphi 0, %s72
    $region4: #{embedding_lookup.1} parent=1 // loop_header_branch
      %14 = sbr.rel (%p12) target = $region8
    $region5: #{embedding_lookup.1} parent=1 // loop_body
      %s16 = ssub.s32 %s11, 1
      %s17 = ssub.s32 %s11, 2
      %s18 = sadd.s32 %s11, 1
      %s19 = ssub.s32 %s11, %s18
      %p20 = scmp.eq.s32.totalorder %s19, 0
      %s22 = sadd.s32 %s21, 1
      %s23 = scalar_select %p20, %s21, %s22
      %p26 = pneg %p20
      %p27 = scmp.eq.s32.totalorder %s11, 1
      %p28 = por %p26, %p27
      %p29 = scmp.ne.s32.totalorder %s21, %s24
      %p30 = scmp.eq.s32.totalorder %s11, 0
      %p31 = por %p29, %p30
      %p32 = scmp.ne.s32.totalorder %s21, %s24
      %p33 = scmp.eq.s32.totalorder %s16, 1
      %p34 = por %p32, %p33
      %p35 = scmp.ne.s32.totalorder %s24, %s25
      %p36 = scmp.eq.s32.totalorder %s16, 0
      %p37 = por %p35, %p36
      %p38 = scmp.ne.s32.totalorder %s24, %s25
      %p39 = scmp.eq.s32.totalorder %s17, 1
      %p40 = por %p38, %p39
      %p42 = scmp.ne.s32.totalorder %s25, %s41
      %p43 = scmp.eq.s32.totalorder %s17, 0
      %p44 = por %p42, %p43
      %s46 = sadd.s32 %s45, 1
      %p49 = scmp.eq.s32.totalorder %s11, 1
      %p50 = scmp.ne.s32.totalorder %s45, %s47
      %p51 = scmp.eq.s32.totalorder %s11, 0
      %p52 = por %p50, %p51
      %p53 = scmp.ne.s32.totalorder %s45, %s47
      %p54 = scmp.eq.s32.totalorder %s16, 1
      %p55 = por %p53, %p54
      %p56 = scmp.ne.s32.totalorder %s47, %s48
      %p57 = scmp.eq.s32.totalorder %s16, 0
      %p58 = por %p56, %p57
      %p59 = scmp.ne.s32.totalorder %s47, %s48
      %p60 = scmp.eq.s32.totalorder %s17, 1
      %p61 = por %p59, %p60
      %p63 = scmp.ne.s32.totalorder %s48, %s62
      %p64 = scmp.eq.s32.totalorder %s17, 0
      %p65 = por %p63, %p64
      %s66 = ssub.s32 %s11, %s18
      %p67 = scmp.eq.s32.totalorder %s66, 0
      %s69 = sadd.s32 %s68, 1
      %s70 = scalar_select %p67, %s68, %s69
      %p73 = pneg %p67
      %p74 = scmp.eq.s32.totalorder %s11, 1
      %p75 = por %p73, %p74
      %p76 = scmp.ne.s32.totalorder %s68, %s71
      %p77 = scmp.eq.s32.totalorder %s11, 0
      %p78 = por %p76, %p77
      %p79 = scmp.ne.s32.totalorder %s68, %s71
      %p80 = scmp.eq.s32.totalorder %s16, 1
      %p81 = por %p79, %p80
      %p82 = scmp.ne.s32.totalorder %s71, %s72
      %p83 = scmp.eq.s32.totalorder %s16, 0
      %p84 = por %p82, %p83
      %p85 = scmp.ne.s32.totalorder %s71, %s72
      %p86 = scmp.eq.s32.totalorder %s17, 1
      %p87 = por %p85, %p86
      %p89 = scmp.ne.s32.totalorder %s72, %s88
      %p90 = scmp.eq.s32.totalorder %s17, 0
      %p91 = por %p89, %p90
      %p92 = scmp.le.s32.totalorder 1, %s11
      %p93 = scmp.lt.s32.totalorder %s11, 3
      %p94 = pnand %p92, %p93
      %p95 = pneg %p94
      // Predicated region
      $region9: #{embedding_lookup.1} parent=5 // pred_check
        _
      $region10: #{embedding_lookup.1} parent=5 // pred_check_branch
        %97 = sbr.rel (%p94) target = $region12
      $region11: #{embedding_lookup.1} parent=5 // pred_region
        %s98 = ssub.s32 %s11, 1
        // Predicated region
        $region13: #{embedding_lookup.1} parent=11 // pred_check
          %p99 = pneg %p58
        $region14: #{embedding_lookup.1} parent=11 // pred_check_branch
          %101 = sbr.rel (%p99) target = $region16
        $region15: #{embedding_lookup.1} parent=11 // pred_region
          _
        $region16: #{embedding_lookup.1} parent=11 // pred_fallthru
          _
      $region12: #{embedding_lookup.1} parent=5 // pred_fallthru
        _
      %p102 = scmp.lt.s32.totalorder %s11, 2
      // Predicated region
      $region17: #{embedding_lookup.1} parent=5 // pred_check
        %p103 = pneg %p102
      $region18: #{embedding_lookup.1} parent=5 // pred_check_branch
        %105 = sbr.rel (%p103) target = $region20
      $region19: #{embedding_lookup.1} parent=5 // pred_region
        // Predicated region
        $region21: #{embedding_lookup.1} parent=19 // pred_check
          %p106 = pneg %p31
        $region22: #{embedding_lookup.1} parent=19 // pred_check_branch
          %108 = sbr.rel (%p106) target = $region24
        $region23: #{embedding_lookup.1} parent=19 // pred_region
          %p109 = scmp.lt.s32.totalorder %s11, 1
          %s110 = scalar_select %p109, %s11, 1
          %s111 = smul.addr %s110, 8
          %s112 = scalar_lea.vmem %s0, %s111
        $region24: #{embedding_lookup.1} parent=19 // pred_fallthru
          _
      $region20: #{embedding_lookup.1} parent=5 // pred_fallthru
        _
      %p113 = scmp.le.s32.totalorder 1, %s11
      %p114 = scmp.lt.s32.totalorder %s11, 3
      %p115 = pnand %p113, %p114
      %p116 = pneg %p115
      // Predicated region
      $region25: #{embedding_lookup.1} parent=5 // pred_check
        _
      $region26: #{embedding_lookup.1} parent=5 // pred_check_branch
        %118 = sbr.rel (%p115) target = $region28
      $region27: #{embedding_lookup.1} parent=5 // pred_region
        %s119 = ssub.s32 %s11, 1
        %p120 = scmp.lt.s32.totalorder %s16, 1
        %s121 = scalar_select %p120, %s16, 1
        %s122 = smul.addr %s121, 8
        %s123 = scalar_lea.vmem %s0, %s122
        %p124 = pneg %p37
        %p125 = pneg %p34
        %p126 = pneg %p58
        %p127 = pneg %p55
        %p128 = pneg %p84
        %p129 = pneg %p81
        %s130 = sand.u32 %s71, 1
        %s131 = scalar_lea.sflag [#allocation3], %s130
        %s132 = sand.u32 %s71, 1
        %s133 = smul.addr %s132, 8
        %s134 = scalar_lea.vmem [#allocation2], %s133
        %p135 = scmp.lt.s32.totalorder %s16, 1
        %s136 = scalar_select %p135, %s16, 1
        %s137 = smul.addr %s136, 8
        %s138 = scalar_lea.vmem %s0, %s137
        %v140 = vld [vmem:[%s1] sm:$0xff]
        %v141 = vld [vmem:[%s1 + $0x8] sm:$0xff]
        %v142 = vld [vmem:[%s1 + $0x10] sm:$0xff]
        %v143 = vld [vmem:[%s1 + $0x18] sm:$0xff]
        %v144 = vld [vmem:[%s1 + $0x20] sm:$0xff]
        %v145 = vld [vmem:[%s1 + $0x28] sm:$0xff]
        %v146 = vld [vmem:[%s1 + $0x30] sm:$0xff]
        %v147 = vld [vmem:[%s1 + $0x38] sm:$0xff]
        %v156 = vand.u32 %v140, 4294901760
        %v157 = vand.u32 %v141, 4294901760
        %v158 = vand.u32 %v142, 4294901760
        %v159 = vand.u32 %v143, 4294901760
        %v160 = vand.u32 %v144, 4294901760
        %v161 = vand.u32 %v145, 4294901760
        %v162 = vand.u32 %v146, 4294901760
        %v163 = vand.u32 %v147, 4294901760
        %v172 = vsub.f32 %v140, %v156
        %v173 = vsub.f32 %v141, %v157
        %v174 = vsub.f32 %v142, %v158
        %v175 = vsub.f32 %v143, %v159
        %v176 = vsub.f32 %v144, %v160
        %v177 = vsub.f32 %v145, %v161
        %v178 = vsub.f32 %v146, %v162
        %v179 = vsub.f32 %v147, %v163
        %v188 = vand.u32 %v172, 4294901760
        %v189 = vand.u32 %v173, 4294901760
        %v190 = vand.u32 %v174, 4294901760
        %v191 = vand.u32 %v175, 4294901760
        %v192 = vand.u32 %v176, 4294901760
        %v193 = vand.u32 %v177, 4294901760
        %v194 = vand.u32 %v178, 4294901760
        %v195 = vand.u32 %v179, 4294901760
        %v204 = vsub.f32 %v172, %v188
        %v205 = vsub.f32 %v173, %v189
        %v206 = vsub.f32 %v174, %v190
        %v207 = vsub.f32 %v175, %v191
        %v208 = vsub.f32 %v176, %v192
        %v209 = vsub.f32 %v177, %v193
        %v210 = vsub.f32 %v178, %v194
        %v211 = vsub.f32 %v179, %v195
        %v212 = vpack.c.bf16 %v157, %v156
        %v213 = vpack.c.bf16 %v159, %v158
        %v214 = vpack.c.bf16 %v161, %v160
        %v215 = vpack.c.bf16 %v163, %v162
        %v216 = vpack.c.bf16 %v189, %v188
        %v217 = vpack.c.bf16 %v191, %v190
        %v218 = vpack.c.bf16 %v193, %v192
        %v219 = vpack.c.bf16 %v195, %v194
        %v220 = vpack.c.bf16 %v205, %v204
        %v221 = vpack.c.bf16 %v207, %v206
        %v222 = vpack.c.bf16 %v209, %v208
        %v223 = vpack.c.bf16 %v211, %v210
        %v224 = vld [vmem:[%s138] sm:$0xff]
        %v225 = vlaneseq
        %v226 = vand.u32 %v225, 127
        %227 = vset.pattern.permute.xlu0 0
        %228 = vperm.xlu0 %227, %v224
        %v229 = vpop.permute.xlu0 %228
        %vm230 = vcmp.eq.s32.totalorder %v229, %v226
        %v231 = vsel %vm230, 1, 0
        %v232 = vcvt.s32.f32 %v231
        %v233 = vpack.c.bf16 %v232, %v232
        %vm234 = vcmask 523264
        %v236 = vsel %vm234, %v233, 0
        %238 = vmatprep.subr.bf16.mxu0 0
        %239 = vmatpush1.bf16.msra.mxu0 %v216
        %240 = vmatprep.subr.bf16.mxu0 0
        %241 = vmatpush1.bf16.msra.mxu0 %v217
        %242 = vmatprep.subr.bf16.mxu0 0
        %243 = vmatpush1.bf16.msra.mxu0 %v218
        %244 = vmatprep.subr.bf16.mxu0 0
        %245 = vmatpush1.bf16.msra.mxu0 %v219
        %246 = vmatprep.subr.bf16.mxu0 0
        %247 = vmatpush1.bf16.msra.mxu0 0
        %248 = vmatprep.subr.bf16.mxu0 0
        %249 = vmatpush1.bf16.msra.mxu0 0
        %250 = vmatprep.subr.bf16.mxu0 0
        %251 = vmatpush1.bf16.msra.mxu0 0
        %252 = vmatprep.subr.bf16.mxu0 0
        %253 = vmatpush1.bf16.msra.mxu0 0
        %254 = vmatprep.subr.bf16.mxu0 0
        %255 = vmatpush1.bf16.msra.mxu0 0
        %256 = vmatprep.subr.bf16.mxu0 0
        %257 = vmatpush1.bf16.msra.mxu0 0
        %258 = vmatprep.subr.bf16.mxu0 0
        %259 = vmatpush1.bf16.msra.mxu0 0
        %260 = vmatprep.subr.bf16.mxu0 0
        %261 = vmatpush1.bf16.msra.mxu0 0
        %262 = vmatprep.subr.bf16.mxu0 0
        %263 = vmatpush1.bf16.msra.mxu0 0
        %264 = vmatprep.subr.bf16.mxu0 0
        %265 = vmatpush1.bf16.msra.mxu0 0
        %266 = vmatprep.subr.bf16.mxu0 0
        %267 = vmatpush1.bf16.msra.mxu0 0
        %268 = vmatprep.subr.bf16.mxu0 0
        %269 = vmatpush1.bf16.msra.mxu0 0
        %270 = vmatprep.mubr.bf16.mxu0 0
        %271 = vmatmul.mubr.bf16.gmra.mrb[0].mxu0 %v236
        %v272 = vpop.f32.mrb[0].mxu0
        %v273 = vadd.f32 0.0, %v272
        %v274 = vpop.f32.mrb[0].mxu0
        %v275 = vpop.f32.mrb[0].mxu0
        %v276 = vpop.f32.mrb[0].mxu0
        %277 = vdwg.mxu0
        %278 = vmatprep.subr.bf16.mxu0 0
        %279 = vmatpush1.bf16.msra.mxu0 %v212
        %280 = vmatprep.subr.bf16.mxu0 0
        %281 = vmatpush1.bf16.msra.mxu0 %v213
        %282 = vmatprep.subr.bf16.mxu0 0
        %283 = vmatpush1.bf16.msra.mxu0 %v214
        %284 = vmatprep.subr.bf16.mxu0 0
        %285 = vmatpush1.bf16.msra.mxu0 %v215
        %286 = vmatprep.subr.bf16.mxu0 0
        %287 = vmatpush1.bf16.msra.mxu0 0
        %288 = vmatprep.subr.bf16.mxu0 0
        %289 = vmatpush1.bf16.msra.mxu0 0
        %290 = vmatprep.subr.bf16.mxu0 0
        %291 = vmatpush1.bf16.msra.mxu0 0
        %292 = vmatprep.subr.bf16.mxu0 0
        %293 = vmatpush1.bf16.msra.mxu0 0
        %294 = vmatprep.subr.bf16.mxu0 0
        %295 = vmatpush1.bf16.msra.mxu0 0
        %296 = vmatprep.subr.bf16.mxu0 0
        %297 = vmatpush1.bf16.msra.mxu0 0
        %298 = vmatprep.subr.bf16.mxu0 0
        %299 = vmatpush1.bf16.msra.mxu0 0
        %300 = vmatprep.subr.bf16.mxu0 0
        %301 = vmatpush1.bf16.msra.mxu0 0
        %302 = vmatprep.subr.bf16.mxu0 0
        %303 = vmatpush1.bf16.msra.mxu0 0
        %304 = vmatprep.subr.bf16.mxu0 0
        %305 = vmatpush1.bf16.msra.mxu0 0
        %306 = vmatprep.subr.bf16.mxu0 0
        %307 = vmatpush1.bf16.msra.mxu0 0
        %308 = vmatprep.subr.bf16.mxu0 0
        %309 = vmatpush1.bf16.msra.mxu0 0
        %310 = vmatprep.mubr.bf16.mxu0 0
        %311 = vmatmul.mubr.bf16.gmra.mrb[0].mxu0 %v236
        %v312 = vpop.f32.mrb[0].mxu0
        %v313 = vadd.f32 %v273, %v312
        %v314 = vpop.f32.mrb[0].mxu0
        %v315 = vpop.f32.mrb[0].mxu0
        %v316 = vpop.f32.mrb[0].mxu0
        %317 = vdwg.mxu0
        %318 = vmatprep.subr.bf16.mxu0 0
        %319 = vmatpush1.bf16.msra.mxu0 %v220
        %320 = vmatprep.subr.bf16.mxu0 0
        %321 = vmatpush1.bf16.msra.mxu0 %v221
        %322 = vmatprep.subr.bf16.mxu0 0
        %323 = vmatpush1.bf16.msra.mxu0 %v222
        %324 = vmatprep.subr.bf16.mxu0 0
        %325 = vmatpush1.bf16.msra.mxu0 %v223
        %326 = vmatprep.subr.bf16.mxu0 0
        %327 = vmatpush1.bf16.msra.mxu0 0
        %328 = vmatprep.subr.bf16.mxu0 0
        %329 = vmatpush1.bf16.msra.mxu0 0
        %330 = vmatprep.subr.bf16.mxu0 0
        %331 = vmatpush1.bf16.msra.mxu0 0
        %332 = vmatprep.subr.bf16.mxu0 0
        %333 = vmatpush1.bf16.msra.mxu0 0
        %334 = vmatprep.subr.bf16.mxu0 0
        %335 = vmatpush1.bf16.msra.mxu0 0
        %336 = vmatprep.subr.bf16.mxu0 0
        %337 = vmatpush1.bf16.msra.mxu0 0
        %338 = vmatprep.subr.bf16.mxu0 0
        %339 = vmatpush1.bf16.msra.mxu0 0
        %340 = vmatprep.subr.bf16.mxu0 0
        %341 = vmatpush1.bf16.msra.mxu0 0
        %342 = vmatprep.subr.bf16.mxu0 0
        %343 = vmatpush1.bf16.msra.mxu0 0
        %344 = vmatprep.subr.bf16.mxu0 0
        %345 = vmatpush1.bf16.msra.mxu0 0
        %346 = vmatprep.subr.bf16.mxu0 0
        %347 = vmatpush1.bf16.msra.mxu0 0
        %348 = vmatprep.subr.bf16.mxu0 0
        %349 = vmatpush1.bf16.msra.mxu0 0
        %350 = vmatprep.mubr.bf16.mxu0 0
        %351 = vmatmul.mubr.bf16.gmra.mrb[0].mxu0 %v236
        %v352 = vpop.f32.mrb[0].mxu0
        %v353 = vadd.f32 0.0, %v352
        %v354 = vpop.f32.mrb[0].mxu0
        %v355 = vpop.f32.mrb[0].mxu0
        %v356 = vpop.f32.mrb[0].mxu0
        %357 = vdwg.mxu0
        %v358 = vadd.f32 %v313, %v353
        %vm359 = vcmask 261120
        %360 = vst.msk [vmem:[%s134] sm:$0xff] %vm359, %v358
        %s361 = sand.u32 %s71, 1
        %s362 = scalar_lea.sflag [#allocation3], %s361
        %s363 = sand.u32 %s71, 1
        %s364 = smul.addr %s363, 8
        %s365 = scalar_lea.vmem [#allocation2], %s364
        // Predicated region
        $region29: #{embedding_lookup.1} parent=27 // pred_check
          %p366 = pneg %p81
        $region30: #{embedding_lookup.1} parent=27 // pred_check_branch
          %368 = sbr.rel (%p366) target = $region32
        $region31: #{embedding_lookup.1} parent=27 // pred_region
          %s370 = ssub.s32 128, 128
          %371 = vsyncadd %s362, %s370
          %s372 = smul.addr %s16, 128
          %s373 = scalar_lea.hbm %s2, %s372
          %s375 = sshll.u32 %s365, 4
          %s376 = int_to_ptr.vmem [resolvable:$true] %s375
          %378 = dma.vmem_to_hbm [thread:$0]  %s376, 128, %s373, %s362
        $region32: #{embedding_lookup.1} parent=27 // pred_fallthru
          _
      $region28: #{embedding_lookup.1} parent=5 // pred_fallthru
        _
      %p379 = scmp.le.s32.totalorder 2, %s11
      // Predicated region
      $region33: #{embedding_lookup.1} parent=5 // pred_check
        %p380 = pneg %p379
      $region34: #{embedding_lookup.1} parent=5 // pred_check_branch
        %382 = sbr.rel (%p380) target = $region36
      $region35: #{embedding_lookup.1} parent=5 // pred_region
        %s383 = ssub.s32 %s11, 2
        // Predicated region
        $region37: #{embedding_lookup.1} parent=35 // pred_check
          %p384 = pneg %p87
        $region38: #{embedding_lookup.1} parent=35 // pred_check_branch
          %386 = sbr.rel (%p384) target = $region40
        $region39: #{embedding_lookup.1} parent=35 // pred_region
          %s387 = sand.u32 %s72, 1
          %s388 = scalar_lea.sflag [#allocation3], %s387
          %s389 = sand.u32 %s72, 1
          %s390 = smul.addr %s389, 8
          %s391 = scalar_lea.vmem [#allocation2], %s390
          %392 = dma.done %s388, 128
        $region40: #{embedding_lookup.1} parent=35 // pred_fallthru
          _
      $region36: #{embedding_lookup.1} parent=5 // pred_fallthru
        _
    $region6: #{embedding_lookup.1} parent=1 // loop_footer
      %s15 = sadd.s32 1, %s11
    $region7: #{embedding_lookup.1} parent=1 // loop_footer_branch
      %10 = sbr.rel target = $region3
    $region8: #{embedding_lookup.1} parent=1 // loop_exit
      _
    %393 = vsyncpa [#allocation3], 1
    %s394 = scalar_lea.sflag [#allocation3], 1
    %395 = vsyncpa %s394, 1

</llo_original>
